<compile_context>
chip_gen: v6e
topology: v6e:2x2x1
jax: 0.10.0
libtpu: 0.0.40
codegen_flags: <defaults>
</compile_context>

<pallas_src>
import jax
import jax.numpy as jnp
from jax import lax
from jax.experimental import pallas as pl
from jax.experimental.pallas import tpu as pltpu


def _make_vloss_kernel(block_b, total_b, d):
    need_mask = (total_b % block_b) != 0

    def kernel(mu_ref, lv_ref, out_ref):
        # mu_ref / lv_ref: (block_b, 2*d) with the two components packed along
        # the last (lane) dim: [:, :d] = component 0, [:, d:] = component 1.
        x_mu = mu_ref[...].astype(jnp.float32)
        x_lv = lv_ref[...].astype(jnp.float32)

        mp = x_mu[:, :d]
        mq = x_mu[:, d:]
        lvp = x_lv[:, :d]
        lvq = x_lv[:, d:]

        # exp computed once per component and reused for both sm and norm.
        exp_p = jnp.exp(lvp)
        exp_q = jnp.exp(lvq)

        # eq term:
        #   -0.5*((lvp/2 - lSm) - (lvq/2 - lSm)) == -0.25*(lvp - lvq)
        #   (mp-mm)^2 + (mq-mm)^2 == 0.5*(mp-mq)^2 with mm = 0.5*(mp+mq)
        #   => 0.25 * (...) / sm == 0.25*(mp-mq)^2 / (exp_p + exp_q)
        diff = mp - mq
        eq_elems = -0.25 * (lvp - lvq) + 0.25 * (diff * diff) / (exp_p + exp_q)

        # norm term: -0.5 * mean over [B,2,D] == -0.25 * mean_{B,D}(np + nq)
        norm_elems = -0.25 * (
            (1.0 + lvp - mp * mp - exp_p) + (1.0 + lvq - mq * mq - exp_q)
        )

        elems = eq_elems + norm_elems

        if need_mask:
            rows = lax.broadcasted_iota(jnp.int32, elems.shape, 0)
            valid = (pl.program_id(0) * block_b + rows) < total_b
            elems = jnp.where(valid, elems, 0.0)

        # Single fused reduction per tile; final 1/(B*D) applied outside.
        out_ref[0, 0] = jnp.sum(elems)

    return kernel


def vloss(mu, log_var, *, block_b=None):
    """mu, log_var: [B, 2, D] arrays. Returns scalar loss (float32)."""
    assert mu.shape == log_var.shape and mu.ndim == 3 and mu.shape[1] == 2
    B, _, D = mu.shape

    # Free reshape (merges contiguous trailing dims -> bitcast); avoids
    # materializing the four [B, D] component slices in HBM.
    mu2 = mu.reshape(B, 2 * D)
    lv2 = log_var.reshape(B, 2 * D)

    if block_b is None:
        # 2 input streams x 2 pipeline buffers x (2*D) f32 per tile row.
        # Keep streamed inputs around <=12 MiB so the tile fits comfortably in
        # scoped VMEM on every generation (v7x has only 64 MiB physical).
        row_bytes = 2 * 2 * (2 * D) * 4
        block_b = (12 * 1024 * 1024) // row_bytes
        block_b = max(8, min(block_b, 1024))
    block_b = int(block_b)
    if block_b >= B:
        block_b = B           # full extent -> always layout-legal
    else:
        block_b = max(8, (block_b // 8) * 8)

    num_tiles = pl.cdiv(B, block_b)
    kernel = _make_vloss_kernel(block_b, B, D)

    in_spec = pl.BlockSpec((block_b, 2 * D), lambda i: (i, 0))
    partials = pl.pallas_call(
        kernel,
        grid=(num_tiles,),
        in_specs=[in_spec, in_spec],
        out_specs=pl.BlockSpec((1, 1), lambda i: (i, 0),
                               memory_space=pltpu.SMEM),
        out_shape=jax.ShapeDtypeStruct((num_tiles, 1), jnp.float32),
        compiler_params=pltpu.CompilerParams(
            dimension_semantics=("parallel",),
            vmem_limit_bytes=32 * 1024 * 1024,
        ),
    )(mu2, lv2)

    return jnp.sum(partials) / jnp.float32(B * D)


def _vloss_ref(mu, log_var):
    lvp = log_var[:, 0, :]
    lvq = log_var[:, 1, :]
    mp = mu[:, 0, :]
    mq = mu[:, 1, :]
    sm = 0.5 * (jnp.exp(lvp) + jnp.exp(lvq))
    lsm = jnp.log(sm) / 2
    mm = 0.5 * (mp + mq)
    eq = (
        -0.5 * ((lvp / 2 - lsm) - (lvq / 2 - lsm))
        + 0.25 * (((mp - mm) ** 2 + (mq - mm) ** 2) / sm)
    ).mean()
    norm = -0.5 * (1 + log_var - mu**2 - jnp.exp(log_var)).mean()
    return eq + norm


if __name__ == "__main__":
    key = jax.random.PRNGKey(0)
    k_mu, k_lv = jax.random.split(key)
    B, D = 4, 32
    mu = jax.random.normal(k_mu, (B, 2, D), dtype=jnp.float32)
    log_var = 0.5 * jax.random.normal(k_lv, (B, 2, D), dtype=jnp.float32)

    loss = jax.block_until_ready(vloss(mu, log_var))
    ref = jax.block_until_ready(_vloss_ref(mu, log_var))
    assert jnp.allclose(loss, ref, rtol=1e-5, atol=1e-5), (loss, ref)
    print("KERNEL_OK")
</pallas_src>

<mosaic_0001>
module attributes {stable_mosaic.version = 11 : i64} {
  func.func @kernel(%arg0: i32, %arg1: memref<4x64xf32, #tpu.memory_space<vmem>>, %arg2: memref<4x64xf32, #tpu.memory_space<vmem>>, %arg3: memref<1x1xf32, #tpu.memory_space<smem>>) attributes {dimension_semantics = [#tpu.dimension_semantics<parallel>], iteration_bounds = array<i64: 1>, scalar_prefetch = 0 : i64, scratch_operands = 0 : i64, tpu.core_type = #tpu.core_type<tc>, window_params = [{transform_indices = @transform_0, window_bounds = array<i64: 4, 64>}, {transform_indices = @transform_1, window_bounds = array<i64: 4, 64>}, {transform_indices = @transform_2, window_bounds = array<i64: 1, 1>}]} {
    %c0 = arith.constant 0 : index
    %c0_0 = arith.constant 0 : index
    %0 = vector.load %arg1[%c0, %c0_0] : memref<4x64xf32, #tpu.memory_space<vmem>>, vector<4x64xf32>
    %c0_1 = arith.constant 0 : index
    %c0_2 = arith.constant 0 : index
    %1 = vector.load %arg2[%c0_1, %c0_2] : memref<4x64xf32, #tpu.memory_space<vmem>>, vector<4x64xf32>
    %2 = vector.extract_strided_slice %0 {offsets = [0, 0], sizes = [4, 32], strides = [1, 1]} : vector<4x64xf32> to vector<4x32xf32>
    %3 = vector.extract_strided_slice %0 {offsets = [0, 32], sizes = [4, 32], strides = [1, 1]} : vector<4x64xf32> to vector<4x32xf32>
    %4 = vector.extract_strided_slice %1 {offsets = [0, 0], sizes = [4, 32], strides = [1, 1]} : vector<4x64xf32> to vector<4x32xf32>
    %5 = vector.extract_strided_slice %1 {offsets = [0, 32], sizes = [4, 32], strides = [1, 1]} : vector<4x64xf32> to vector<4x32xf32>
    %6 = math.exp %4 : vector<4x32xf32>
    %7 = math.exp %5 : vector<4x32xf32>
    %8 = arith.subf %2, %3 : vector<4x32xf32>
    %9 = arith.subf %4, %5 : vector<4x32xf32>
    %cst = arith.constant -2.500000e-01 : f32
    %10 = vector.broadcast %cst : f32 to vector<4x32xf32>
    %11 = arith.mulf %10, %9 : vector<4x32xf32>
    %12 = arith.mulf %8, %8 : vector<4x32xf32>
    %cst_3 = arith.constant 2.500000e-01 : f32
    %13 = vector.broadcast %cst_3 : f32 to vector<4x32xf32>
    %14 = arith.mulf %13, %12 : vector<4x32xf32>
    %15 = arith.addf %6, %7 : vector<4x32xf32>
    %16 = arith.divf %14, %15 : vector<4x32xf32>
    %17 = arith.addf %11, %16 : vector<4x32xf32>
    %cst_4 = arith.constant 1.000000e+00 : f32
    %18 = vector.broadcast %cst_4 : f32 to vector<4x32xf32>
    %19 = arith.addf %18, %4 : vector<4x32xf32>
    %20 = arith.mulf %2, %2 : vector<4x32xf32>
    %21 = arith.subf %19, %20 : vector<4x32xf32>
    %22 = arith.subf %21, %6 : vector<4x32xf32>
    %cst_5 = arith.constant 1.000000e+00 : f32
    %23 = vector.broadcast %cst_5 : f32 to vector<4x32xf32>
    %24 = arith.addf %23, %5 : vector<4x32xf32>
    %25 = arith.mulf %3, %3 : vector<4x32xf32>
    %26 = arith.subf %24, %25 : vector<4x32xf32>
    %27 = arith.subf %26, %7 : vector<4x32xf32>
    %28 = arith.addf %22, %27 : vector<4x32xf32>
    %cst_6 = arith.constant -2.500000e-01 : f32
    %29 = vector.broadcast %cst_6 : f32 to vector<4x32xf32>
    %30 = arith.mulf %29, %28 : vector<4x32xf32>
    %31 = arith.addf %17, %30 : vector<4x32xf32>
    %32 = vector.shape_cast %31 : vector<4x32xf32> to vector<1x4x32xf32>
    %cst_7 = arith.constant dense<0.000000e+00> : vector<1xf32>
    %33 = vector.multi_reduction <add>, %32, %cst_7 [1, 2] : vector<1x4x32xf32> to vector<1xf32>
    %34 = vector.shape_cast %33 : vector<1xf32> to vector<1x1x1xf32>
    %35 = vector.extract %34[0, 0, 0] : f32 from vector<1x1x1xf32>
    %c0_8 = arith.constant 0 : index
    %c0_9 = arith.constant 0 : index
    %36 = memref.load %arg3[%c0_8, %c0_9] : memref<1x1xf32, #tpu.memory_space<smem>>
    memref.store %35, %arg3[%c0_8, %c0_9] : memref<1x1xf32, #tpu.memory_space<smem>>
    return
  }
  func.func @transform_0(%arg0: i32) -> (i32, i32) {
    %c0_i32 = arith.constant 0 : i32
    %c0_i32_0 = arith.constant 0 : i32
    return %arg0, %c0_i32 : i32, i32
  }
  func.func @transform_1(%arg0: i32) -> (i32, i32) {
    %c0_i32 = arith.constant 0 : i32
    %c0_i32_0 = arith.constant 0 : i32
    return %arg0, %c0_i32 : i32, i32
  }
  func.func @transform_2(%arg0: i32) -> (i32, i32) {
    %c0_i32 = arith.constant 0 : i32
    %c0_i32_0 = arith.constant 0 : i32
    return %arg0, %c0_i32 : i32, i32
  }
}

</mosaic_0001>

<llo_original>
// kernel: tpu_custom_call.1
$region0: #{tpu_custom_call.1}
  #allocation0 [shape = 'u32[]', space=smem, size = 0x4, offset = 0x4, fixed_abs, tag = 'smem constant byte address 0x4 - core index']
  #allocation1 [shape = 'u32[144,128]{1,0:T(1,128)}', space=vmem, size = 0x12000, scoped, tag = 'internal scratch']
  %s0 = inlined_call_operand.hbm [shape: f32[4,64], index: 0, kind: input, shape index: {}]
  %s1 = inlined_call_operand.hbm [shape: f32[4,64], index: 1, kind: input, shape index: {}]
  %s2 = inlined_call_operand.hbm [shape: f32[1,1], index: 2, kind: output, shape index: {}]
  %s3 = sld [smem:[#allocation0]]
  $region26: #{tpu_custom_call.1} parent=0
    _
  %s5 = ssub.s32 1, %s3
  %s6 = scalar_select 0, %s5, %s3
  $region1: #{tpu_custom_call.1} parent=0
    #allocation2 [shape = 'u8[2048]{0}', space=vmem, size = 0x800, scoped, tag = 'input window, operand 0, single buffered']
    #allocation3 [shape = 's32[1]{0}', space=sflag, size = 0x4, scoped, tag = 'scoped memory for tpu_custom_call.1']
    #allocation4 [shape = 's32[1]{0}', space=sflag, size = 0x4, scoped, tag = 'scoped memory for tpu_custom_call.1']
    #allocation5 [shape = 'u8[2048]{0}', space=vmem, size = 0x800, scoped, tag = 'input window, operand 1, single buffered']
    #allocation6 [shape = 's32[1]{0}', space=sflag, size = 0x4, scoped, tag = 'scoped memory for tpu_custom_call.1']
    #allocation7 [shape = 'u8[512]{0}', space=smem, size = 0x200, scoped, tag = 'output window, operand 0, single buffered']
    %7 = vsyncpa [#allocation3], 0
    %8 = vsyncpa [#allocation6], 0
    %9 = vsyncpa [#allocation4], 0
    // Predicated region
    $region2: #{tpu_custom_call.1} parent=1 // pred_check
      _
    $region3: #{tpu_custom_call.1} parent=1 // pred_check_branch
      %11 = sbr.rel (0) target = $region5
    $region4: #{tpu_custom_call.1} parent=1 // pred_region
      %s13 = ssub.s32 64, 64
      %14 = vsyncadd [#allocation3], %s13
      %s16 = sshll.u32 [#allocation2], 4
      %s17 = int_to_ptr.vmem [resolvable:$true] %s16
      %19 = dma.hbm_to_vmem [thread:$0]  %s0, 64, %s17, [#allocation3]
    $region5: #{tpu_custom_call.1} parent=1 // pred_fallthru
      _
    // Predicated region
    $region6: #{tpu_custom_call.1} parent=1 // pred_check
      _
    $region7: #{tpu_custom_call.1} parent=1 // pred_check_branch
      %21 = sbr.rel (0) target = $region9
    $region8: #{tpu_custom_call.1} parent=1 // pred_region
      %s23 = ssub.s32 64, 64
      %24 = vsyncadd [#allocation6], %s23
      %s26 = sshll.u32 [#allocation5], 4
      %s27 = int_to_ptr.vmem [resolvable:$true] %s26
      %29 = dma.hbm_to_vmem [thread:$0]  %s1, 64, %s27, [#allocation6]
    $region9: #{tpu_custom_call.1} parent=1 // pred_fallthru
      _
    // Predicated region
    $region10: #{tpu_custom_call.1} parent=1 // pred_check
      _
    $region11: #{tpu_custom_call.1} parent=1 // pred_check_branch
      %31 = sbr.rel (0) target = $region13
    $region12: #{tpu_custom_call.1} parent=1 // pred_region
      %32 = dma.done [#allocation3], 64
    $region13: #{tpu_custom_call.1} parent=1 // pred_fallthru
      _
    // Predicated region
    $region14: #{tpu_custom_call.1} parent=1 // pred_check
      _
    $region15: #{tpu_custom_call.1} parent=1 // pred_check_branch
      %34 = sbr.rel (0) target = $region17
    $region16: #{tpu_custom_call.1} parent=1 // pred_region
      %35 = dma.done [#allocation6], 64
    $region17: #{tpu_custom_call.1} parent=1 // pred_fallthru
      _
    %v36 = vld [vmem:[#allocation2] sm:$0xf]
    %v37 = vld [vmem:[#allocation5] sm:$0xf]
    %v38 = vmul.f32 %v37, 1.442695
    %v39 = vpow.pop %v38
    %41 = vrot.lane.b32.xlu0 %v36, 96
    %v42 = vpop.permute.xlu0 %41
    %v44 = vsub.f32 %v36, %v42
    %46 = vrot.lane.b32.xlu0 %v37, 96
    %v47 = vpop.permute.xlu0 %46
    %v49 = vsub.f32 %v37, %v47
    %v50 = vmul.f32 %v49, -0.25
    %v51 = vmul.f32 %v44, %v44
    %v52 = vmul.f32 %v51, 0.25
    %54 = vrot.lane.b32.xlu0 %v39, 96
    %v55 = vpop.permute.xlu0 %54
    %v57 = vadd.f32 %v39, %v55
    %v58 = vrcp.pop %v57
    %v59 = vmul.f32 %v52, %v58
    %v60 = vadd.f32 %v50, %v59
    %v61 = vadd.f32 %v37, 1.0
    %v62 = vmul.f32 %v36, %v36
    %v63 = vsub.f32 %v61, %v62
    %v64 = vsub.f32 %v63, %v39
    %66 = vrot.lane.b32.xlu0 %v64, 96
    %v67 = vpop.permute.xlu0 %66
    %v69 = vadd.f32 %v64, %v67
    %v70 = vmul.f32 %v69, -0.25
    %v71 = vadd.f32 %v60, %v70
    %vm72 = vcmask 257024
    %v73 = vsel %vm72, %v71, 0.0
    %74 = vadd.xlane.f32.xlu0 %v73
    %v75 = vpop.xlane.xlu0 %74
    %v76 = vrot.slane %v75, 4
    %v77 = vadd.f32 %v75, %v76
    %v78 = vrot.slane %v77, 2
    %v79 = vadd.f32 %v77, %v78
    %v80 = vrot.slane %v79, 1
    %v81 = vadd.f32 %v79, %v80
    %s82 = vtos %v81
    %s83 = scalar_lea.smem [#allocation7], 0
    %84 = sst [smem:[%s83]] %s82
    // Predicated region
    $region18: #{tpu_custom_call.1} parent=1 // pred_check
      _
    $region19: #{tpu_custom_call.1} parent=1 // pred_check_branch
      %86 = sbr.rel (0) target = $region21
    $region20: #{tpu_custom_call.1} parent=1 // pred_region
      %s88 = ssub.s32 16, 16
      %89 = vsyncadd [#allocation4], %s88
      %92 = dma.smem_to_hbm [#allocation7], 16, %s2, [#allocation4]
    $region21: #{tpu_custom_call.1} parent=1 // pred_fallthru
      _
    // Predicated region
    $region22: #{tpu_custom_call.1} parent=1 // pred_check
      _
    $region23: #{tpu_custom_call.1} parent=1 // pred_check_branch
      %94 = sbr.rel (0) target = $region25
    $region24: #{tpu_custom_call.1} parent=1 // pred_region
      %95 = dma.done [#allocation4], 16
    $region25: #{tpu_custom_call.1} parent=1 // pred_fallthru
      _
    %96 = sfence
    %97 = vsyncpa [#allocation3], 1
    %98 = vsyncpa [#allocation6], 1
    %99 = vsyncpa [#allocation4], 1

</llo_original>
